<compile_context>
chip_gen: v7x
topology: tpu7x:2x2x1
jax: 0.10.0
libtpu: 0.0.40
codegen_flags: <defaults>
</compile_context>

<pallas_src>
import functools

import jax
import jax.numpy as jnp
from jax.experimental import pallas as pl
from jax.experimental.pallas import tpu as pltpu


def _round_up(x: int, m: int) -> int:
    return (x + m - 1) // m * m


def _pad_dim(d: int) -> int:
    # <=128 -> 128 (v5e-optimal, minimum lane-dense width); larger -> 256-aligned
    # for the v6e/v7x 256x256 MXU (still a multiple of 128, so fine on v5e too).
    return 128 if d <= 128 else _round_up(d, 256)


def _pick_row_tile(n_pad: int, a_tile_budget_bytes: int = 24 * 1024 * 1024) -> int:
    # Largest row tile whose double-buffered bf16 (tm x n_pad) A tile fits the budget
    # (sized for v7x's 64 MiB VMEM; v5e/v6e have more headroom).
    for tm in (1024, 512, 256, 128):
        if n_pad % tm == 0 and 2 * tm * n_pad * 2 <= a_tile_budget_bytes:
            return tm
    return 128


# ----------------------------- Pallas kernel ---------------------------------
def _fused_gcn_kernel(a_ref, x_ref, w_ref, b_ref, o_ref, h_ref, hw_ref):
    """One (layer, row-tile) grid step of the fused GCN stack.

    a_ref : [tm, Np]     bf16 row tile of normalized adjacency (streamed from HBM)
    x_ref : [Np, Fp]     bf16 padded node features (full block)
    w_ref : [1, Fp, Fp]  bf16 weight of the current layer
    b_ref : [1, 1, Fp]   f32  bias of the current layer
    o_ref : [tm, Fp]     f32  output row tile
    h_ref : [Np, Fp]     bf16 VMEM scratch: resident activation (persists across steps)
    hw_ref: [Np, Fp]     bf16 VMEM scratch: H @ W_l for the current layer
    """
    layer = pl.program_id(0)
    row = pl.program_id(1)
    tm = a_ref.shape[0]
    last_layer = pl.num_programs(0) - 1

    # First grid step: seed the resident activation with the input features.
    @pl.when(jnp.logical_and(layer == 0, row == 0))
    def _():
        h_ref[...] = x_ref[...]

    # Start of each layer: HW = H @ W_l, computed once (cheap: Np x Fp x Fp) and
    # reused by every A row tile of this layer.
    @pl.when(row == 0)
    def _():
        hw = jnp.dot(h_ref[...], w_ref[0], preferred_element_type=jnp.float32)
        hw_ref[...] = hw.astype(hw_ref.dtype)

    # Row tile of A @ (H W); A streams from VMEM tile (BlockSpec double-buffered DMA).
    out = jnp.dot(a_ref[...], hw_ref[...], preferred_element_type=jnp.float32)
    out = out + b_ref[0]                       # f32 epilogue, broadcast [1, Fp]

    @pl.when(layer != last_layer)
    def _():
        act = jnp.maximum(out, 0.0)            # ReLU; dropout(p=0.0) is a no-op
        start = pl.multiple_of(row * tm, tm)
        h_ref[pl.ds(start, tm), :] = act.astype(h_ref.dtype)   # stays on-chip
        o_ref[...] = act                       # keep revisited output block defined

    @pl.when(layer == last_layer)
    def _():
        o_ref[...] = out                       # lane-dense f32 store (Fp % 128 == 0)


# ------------------------------- JAX glue -------------------------------------
def normalized_adjacency(edge_index, num_nodes):
    """Dense D^{-1/2} (A + I) D^{-1/2} from a [2, E] int edge_index.

    Pure setup: call once per graph and cache; NOT part of the hot forward path.
    (If edge_index already contains self-loops, A + I puts 2.0 on that diagonal entry
    before normalization — a slight deviation from torch_geometric's gcn_norm.)
    """
    src, dst = edge_index[0], edge_index[1]
    a = jnp.zeros((num_nodes, num_nodes), jnp.float32)
    a = a.at[src, dst].set(1.0)
    a = a.at[dst, src].set(1.0)                      # treat as undirected
    a = a + jnp.eye(num_nodes, dtype=jnp.float32)    # add self-loops
    deg = jnp.sum(a, axis=1)
    d_inv_sqrt = jnp.where(deg > 0, 1.0 / jnp.sqrt(deg), 0.0)
    return a * d_inv_sqrt[:, None] * d_inv_sqrt[None, :]


def init_params(key, dims):
    """Glorot-uniform weights + zero bias for each conv layer, deterministic."""
    params = []
    for fin, fout in zip(dims[:-1], dims[1:]):
        key, wk = jax.random.split(key)
        limit = jnp.sqrt(6.0 / (fin + fout))
        w = jax.random.uniform(wk, (fin, fout), jnp.float32, -limit, limit)
        b = jnp.zeros((1, fout), jnp.float32)
        params.append((w, b))
    return params


def prepack(a_norm, params):
    """One-time packing (per graph / per model), hoisted out of the hot forward path.

    Returns (a_p bf16 [Np,Np], w_stack bf16 [L,Fp,Fp], b_stack f32 [L,1,Fp]).
    Zero padding is exact: padded adjacency columns are zero (padded nodes never touch
    valid rows) and padded W/b columns are zero (padded feature columns stay zero).
    """
    n = a_norm.shape[0]
    num_layers = len(params)
    dims = [params[0][0].shape[0]] + [w.shape[1] for w, _ in params]
    f_pad = _pad_dim(max(dims))
    n_pad = _pad_dim(n)

    a_p = jnp.zeros((n_pad, n_pad), jnp.float32).at[:n, :n].set(a_norm)
    a_p = a_p.astype(jnp.bfloat16)

    w_stack = jnp.zeros((num_layers, f_pad, f_pad), jnp.float32)
    b_stack = jnp.zeros((num_layers, 1, f_pad), jnp.float32)
    for layer, (w, b) in enumerate(params):
        w_stack = w_stack.at[layer, : w.shape[0], : w.shape[1]].set(w)
        b_stack = b_stack.at[layer, :, : b.shape[1]].set(b)
    w_stack = w_stack.astype(jnp.bfloat16)
    return a_p, w_stack, b_stack


@functools.partial(jax.jit, static_argnames=("f_out",))
def base_gnn_forward(x, a_p, w_stack, b_stack, *, f_out):
    """Mirrors BaseGNN.forward with the whole conv stack fused in ONE pallas_call.

    x:       [N, Fin] f32 node features (only per-call padding happens here)
    a_p:     [Np, Np] bf16 pre-packed normalized adjacency (from prepack())
    w_stack: [L, Fp, Fp] bf16 pre-packed weights
    b_stack: [L, 1, Fp]  f32  pre-packed biases
    """
    n, f_in = x.shape
    num_layers, _, f_pad = w_stack.shape
    n_pad = a_p.shape[0]
    tm = _pick_row_tile(n_pad)

    # Only X is padded per call (tiny); everything else is pre-packed at init time.
    x_p = jnp.pad(x, ((0, n_pad - n), (0, f_pad - f_in))).astype(jnp.bfloat16)

    flops = num_layers * (2 * n_pad * f_pad * f_pad + 2 * n_pad * n_pad * f_pad)
    bytes_accessed = (
        num_layers * a_p.size * 2            # A row tiles streamed once per layer
        + x_p.size * 2 + w_stack.size * 2 + b_stack.size * 4
        + n_pad * f_pad * 4                  # output writeback
    )

    vmem_est = (
        2 * tm * n_pad * 2                   # double-buffered A tile (bf16)
        + n_pad * f_pad * 2                  # X block
        + 2 * n_pad * f_pad * 2              # H + HW scratches
        + 2 * f_pad * f_pad * 2              # double-buffered W_l
        + 2 * f_pad * 4                      # b_l
        + 2 * tm * f_pad * 4                 # double-buffered output tile
    )
    vmem_limit = int(min(max(2 * vmem_est, 16 * 1024 * 1024), 64 * 1024 * 1024))

    out_p = pl.pallas_call(
        _fused_gcn_kernel,
        out_shape=jax.ShapeDtypeStruct((n_pad, f_pad), jnp.float32),
        grid_spec=pltpu.PrefetchScalarGridSpec(
            num_scalar_prefetch=0,
            grid=(num_layers, n_pad // tm),
            in_specs=[
                pl.BlockSpec((tm, n_pad), lambda l, i: (i, 0)),          # A row tile
                pl.BlockSpec((n_pad, f_pad), lambda l, i: (0, 0)),       # X (full)
                pl.BlockSpec((1, f_pad, f_pad), lambda l, i: (l, 0, 0)),  # W_l
                pl.BlockSpec((1, 1, f_pad), lambda l, i: (l, 0, 0)),     # b_l
            ],
            out_specs=pl.BlockSpec((tm, f_pad), lambda l, i: (i, 0)),
            scratch_shapes=[
                pltpu.VMEM((n_pad, f_pad), jnp.bfloat16),  # resident activation H
                pltpu.VMEM((n_pad, f_pad), jnp.bfloat16),  # H @ W_l for current layer
            ],
        ),
        compiler_params=pltpu.CompilerParams(
            dimension_semantics=("arbitrary", "arbitrary"),
            vmem_limit_bytes=vmem_limit,
        ),
        cost_estimate=pl.CostEstimate(
            flops=flops, transcendentals=0, bytes_accessed=bytes_accessed
        ),
    )(a_p, x_p, w_stack, b_stack)

    return out_p[:n, :f_out]


# --------------------------------- main ---------------------------------------
if __name__ == "__main__":
    key = jax.random.PRNGKey(0)

    num_nodes = 64
    in_dim, hidden_dim, out_dim = 32, 32, 16
    num_edges = 256

    k_x, k_e, k_p = jax.random.split(key, 3)
    x = jax.random.normal(k_x, (num_nodes, in_dim), jnp.float32)
    edge_index = jax.random.randint(k_e, (2, num_edges), 0, num_nodes, jnp.int32)

    # 3 convs total: in -> hidden -> hidden -> out
    params = init_params(k_p, [in_dim, hidden_dim, hidden_dim, out_dim])

    # Setup (once per graph / model): normalization + padding + bf16 casts are hoisted
    # out of the hot forward path.
    a_norm = normalized_adjacency(edge_index, num_nodes)
    a_p, w_stack, b_stack = prepack(a_norm, params)
    a_p, w_stack, b_stack = jax.block_until_ready((a_p, w_stack, b_stack))

    out = base_gnn_forward(x, a_p, w_stack, b_stack, f_out=out_dim)
    out = jax.block_until_ready(out)

    assert out.shape == (num_nodes, out_dim)
    assert jnp.all(jnp.isfinite(out))
    print("KERNEL_OK")
</pallas_src>

<mosaic_0001>
module attributes {stable_mosaic.version = 11 : i64} {
  func.func @_fused_gcn_kernel(%arg0: i32, %arg1: i32, %arg2: memref<128x128xbf16, #tpu.memory_space<vmem>>, %arg3: memref<128x128xbf16, #tpu.memory_space<vmem>>, %arg4: memref<1x128x128xbf16, #tpu.memory_space<vmem>>, %arg5: memref<1x1x128xf32, #tpu.memory_space<vmem>>, %arg6: memref<128x128xf32, #tpu.memory_space<vmem>>, %arg7: memref<128x128xbf16, #tpu.memory_space<vmem>>, %arg8: memref<128x128xbf16, #tpu.memory_space<vmem>>) attributes {dimension_semantics = [#tpu.dimension_semantics<arbitrary>, #tpu.dimension_semantics<arbitrary>], iteration_bounds = array<i64: 3, 1>, scalar_prefetch = 0 : i64, scratch_operands = 2 : i64, tpu.core_type = #tpu.core_type<tc>, window_params = [{transform_indices = @transform_0, window_bounds = array<i64: 128, 128>}, {pipeline_mode = #tpu.pipeline_mode<synchronous>, transform_indices = @transform_1, window_bounds = array<i64: 128, 128>}, {transform_indices = @transform_2, window_bounds = array<i64: 1, 128, 128>}, {transform_indices = @transform_3, window_bounds = array<i64: 1, 1, 128>}, {transform_indices = @transform_4, window_bounds = array<i64: 128, 128>}]} {
    %c0_i32 = arith.constant 0 : i32
    %0 = arith.cmpi eq, %arg0, %c0_i32 : i32
    %c0_i32_0 = arith.constant 0 : i32
    %1 = arith.cmpi eq, %arg1, %c0_i32_0 : i32
    %2 = arith.andi %0, %1 : i1
    %3 = arith.extui %2 : i1 to i32
    %c0_i32_1 = arith.constant 0 : i32
    %4 = arith.cmpi ne, %3, %c0_i32_1 : i32
    scf.if %4 {
      %c0_13 = arith.constant 0 : index
      %c0_14 = arith.constant 0 : index
      %21 = vector.load %arg3[%c0_13, %c0_14] : memref<128x128xbf16, #tpu.memory_space<vmem>>, vector<128x128xbf16>
      %c0_15 = arith.constant 0 : index
      %c0_16 = arith.constant 0 : index
      %22 = vector.load %arg7[%c0_15, %c0_16] : memref<128x128xbf16, #tpu.memory_space<vmem>>, vector<128x128xbf16>
      tpu.vector_store %arg7[%c0_15, %c0_16], %21 {strides = array<i32>} : memref<128x128xbf16, #tpu.memory_space<vmem>>, vector<128x128xbf16>,
    } else {
    }
    %c0_i32_2 = arith.constant 0 : i32
    %5 = arith.cmpi eq, %arg1, %c0_i32_2 : i32
    %6 = arith.extui %5 : i1 to i32
    %c0_i32_3 = arith.constant 0 : i32
    %7 = arith.cmpi ne, %6, %c0_i32_3 : i32
    scf.if %7 {
      %c0_13 = arith.constant 0 : index
      %c0_14 = arith.constant 0 : index
      %21 = vector.load %arg7[%c0_13, %c0_14] : memref<128x128xbf16, #tpu.memory_space<vmem>>, vector<128x128xbf16>
      %c0_15 = arith.constant 0 : index
      %c0_16 = arith.constant 0 : index
      %c0_17 = arith.constant 0 : index
      %22 = vector.load %arg4[%c0_15, %c0_16, %c0_17] : memref<1x128x128xbf16, #tpu.memory_space<vmem>>, vector<1x128x128xbf16>
      %23 = vector.shape_cast %22 : vector<1x128x128xbf16> to vector<128x128xbf16>
      %cst_18 = arith.constant dense<0.000000e+00> : vector<128x128xf32>
      %24 = tpu.matmul %21, %23, %cst_18 {dimension_numbers = #tpu.dot_dimension_numbers<[1], [0], [0], [1], [0, 0, 1, 1], [], []>} : vector<128x128xbf16>, vector<128x128xbf16>, vector<128x128xf32> -> vector<128x128xf32>
      %25 = arith.truncf %24 : vector<128x128xf32> to vector<128x128xbf16>
      %c0_19 = arith.constant 0 : index
      %c0_20 = arith.constant 0 : index
      %26 = vector.load %arg8[%c0_19, %c0_20] : memref<128x128xbf16, #tpu.memory_space<vmem>>, vector<128x128xbf16>
      tpu.vector_store %arg8[%c0_19, %c0_20], %25 {strides = array<i32>} : memref<128x128xbf16, #tpu.memory_space<vmem>>, vector<128x128xbf16>,
    } else {
    }
    %c0 = arith.constant 0 : index
    %c0_4 = arith.constant 0 : index
    %8 = vector.load %arg2[%c0, %c0_4] : memref<128x128xbf16, #tpu.memory_space<vmem>>, vector<128x128xbf16>
    %c0_5 = arith.constant 0 : index
    %c0_6 = arith.constant 0 : index
    %9 = vector.load %arg8[%c0_5, %c0_6] : memref<128x128xbf16, #tpu.memory_space<vmem>>, vector<128x128xbf16>
    %cst = arith.constant dense<0.000000e+00> : vector<128x128xf32>
    %10 = tpu.matmul %8, %9, %cst {dimension_numbers = #tpu.dot_dimension_numbers<[1], [0], [0], [1], [0, 0, 1, 1], [], []>} : vector<128x128xbf16>, vector<128x128xbf16>, vector<128x128xf32> -> vector<128x128xf32>
    %c0_7 = arith.constant 0 : index
    %c0_8 = arith.constant 0 : index
    %c0_9 = arith.constant 0 : index
    %11 = vector.load %arg5[%c0_7, %c0_8, %c0_9] : memref<1x1x128xf32, #tpu.memory_space<vmem>>, vector<1x1x128xf32>
    %12 = vector.shape_cast %11 : vector<1x1x128xf32> to vector<1x128xf32>
    %13 = vector.broadcast %12 : vector<1x128xf32> to vector<128x128xf32>
    %14 = arith.addf %10, %13 : vector<128x128xf32>
    %c2_i32 = arith.constant 2 : i32
    %15 = arith.cmpi ne, %arg0, %c2_i32 : i32
    %16 = arith.extui %15 : i1 to i32
    %c0_i32_10 = arith.constant 0 : i32
    %17 = arith.cmpi ne, %16, %c0_i32_10 : i32
    scf.if %17 {
      %cst_13 = arith.constant 0.000000e+00 : f32
      %21 = vector.broadcast %cst_13 : f32 to vector<128x128xf32>
      %22 = arith.maximumf %14, %21 : vector<128x128xf32>
      %c128_i32 = arith.constant 128 : i32
      %23 = arith.muli %arg1, %c128_i32 : i32
      %24 = tpu.assume_multiple %23, 128 : i32
      %25 = arith.truncf %22 : vector<128x128xf32> to vector<128x128xbf16>
      %26 = arith.index_cast %24 : i32 to index
      %c0_14 = arith.constant 0 : index
      %27 = vector.load %arg7[%26, %c0_14] : memref<128x128xbf16, #tpu.memory_space<vmem>>, vector<128x128xbf16>
      tpu.vector_store %arg7[%26, %c0_14], %25 {strides = array<i32>} : memref<128x128xbf16, #tpu.memory_space<vmem>>, vector<128x128xbf16>,
      %c0_15 = arith.constant 0 : index
      %c0_16 = arith.constant 0 : index
      %28 = vector.load %arg6[%c0_15, %c0_16] : memref<128x128xf32, #tpu.memory_space<vmem>>, vector<128x128xf32>
      tpu.vector_store %arg6[%c0_15, %c0_16], %22 {strides = array<i32>} : memref<128x128xf32, #tpu.memory_space<vmem>>, vector<128x128xf32>,
    } else {
    }
    %c2_i32_11 = arith.constant 2 : i32
    %18 = arith.cmpi eq, %arg0, %c2_i32_11 : i32
    %19 = arith.extui %18 : i1 to i32
    %c0_i32_12 = arith.constant 0 : i32
    %20 = arith.cmpi ne, %19, %c0_i32_12 : i32
    scf.if %20 {
      %c0_13 = arith.constant 0 : index
      %c0_14 = arith.constant 0 : index
      %21 = vector.load %arg6[%c0_13, %c0_14] : memref<128x128xf32, #tpu.memory_space<vmem>>, vector<128x128xf32>
      tpu.vector_store %arg6[%c0_13, %c0_14], %14 {strides = array<i32>} : memref<128x128xf32, #tpu.memory_space<vmem>>, vector<128x128xf32>,
    } else {
    }
    return
  }
  func.func @transform_0(%arg0: i32, %arg1: i32) -> (i32, i32) {
    %c0_i32 = arith.constant 0 : i32
    %c0_i32_0 = arith.constant 0 : i32
    return %arg1, %c0_i32 : i32, i32
  }
  func.func @transform_1(%arg0: i32, %arg1: i32) -> (i32, i32) {
    %c0_i32 = arith.constant 0 : i32
    %c0_i32_0 = arith.constant 0 : i32
    %c0_i32_1 = arith.constant 0 : i32
    return %c0_i32, %c0_i32_0 : i32, i32
  }
  func.func @transform_2(%arg0: i32, %arg1: i32) -> (i32, i32, i32) {
    %c0_i32 = arith.constant 0 : i32
    %c0_i32_0 = arith.constant 0 : i32
    %c0_i32_1 = arith.constant 0 : i32
    return %arg0, %c0_i32, %c0_i32_0 : i32, i32, i32
  }
  func.func @transform_3(%arg0: i32, %arg1: i32) -> (i32, i32, i32) {
    %c0_i32 = arith.constant 0 : i32
    %c0_i32_0 = arith.constant 0 : i32
    %c0_i32_1 = arith.constant 0 : i32
    return %arg0, %c0_i32, %c0_i32_0 : i32, i32, i32
  }
  func.func @transform_4(%arg0: i32, %arg1: i32) -> (i32, i32) {
    %c0_i32 = arith.constant 0 : i32
    %c0_i32_0 = arith.constant 0 : i32
    return %arg1, %c0_i32 : i32, i32
  }
}

</mosaic_0001>

<llo_original>
// kernel: base_gnn_forward.1
$region0: #{base_gnn_forward.1}
  #allocation0 [shape = 'u32[]', space=smem, size = 0x4, offset = 0x4, fixed_abs, tag = 'smem constant byte address 0x4 - core index']
  #allocation1 [shape = 'u32[144,128]{1,0:T(1,128)}', space=vmem, size = 0x12000, scoped, tag = 'internal scratch']
  #allocation2 [shape = 'bf16[128,128]{1,0:T(16,128)(2,1)}', space=vmem, size = 0x8000, scoped, tag = 'scratch operand']
  #allocation3 [shape = 'bf16[128,128]{1,0:T(16,128)(2,1)}', space=vmem, size = 0x8000, scoped, tag = 'scratch operand']
  %s0 = inlined_call_operand.hbm [shape: bf16[128,128], index: 0, kind: input, shape index: {}]
  %s1 = inlined_call_operand.vmem [shape: bf16[128,128], index: 1, kind: input, shape index: {}]
  %s2 = inlined_call_operand.vmem [shape: bf16[3,128,128], index: 2, kind: input, shape index: {}]
  %s3 = inlined_call_operand.vmem [shape: f32[3,1,128], index: 3, kind: input, shape index: {}]
  %s4 = inlined_call_operand.vmem [shape: f32[128,128], index: 4, kind: output, shape index: {}]
  %s5 = sld [smem:[#allocation0]]
  $region69: #{base_gnn_forward.1} parent=0
    _
  %s7 = ssub.s32 1, %s5
  %s8 = scalar_select 0, %s7, %s5
  $region1: #{base_gnn_forward.1} parent=0
    #allocation4 [shape = 'u8[32768]{0}', space=vmem, size = 0x8000, scoped, tag = 'input window, operand 0, single buffered']
    #allocation5 [shape = 's32[2]{0}', space=sflag, size = 0x8, scoped, tag = 'scoped memory for base_gnn_forward.1']
    %9 = vsyncpa [#allocation5], 0
    loop: start=0, step=1, limit=5
    $region2: #{base_gnn_forward.1} parent=1 // loop_pre_header
      _
    $region3: #{base_gnn_forward.1} parent=1 // loop_header
      %s11 = sphi 0, %s15
      %p12 = scmp.ge.s32.totalorder %s11, 5
      %s18 = sphi 0, %s30
      %s19 = sphi 0, %s26
      %s20 = sphi 0, %s18
      %s21 = sphi 0, %s19
      %s22 = sphi 0, %s20
      %s23 = sphi 0, %s21
      %s33 = sphi 0, %s35
      %s36 = sphi 0, %s33
      %s37 = sphi 0, %s36
      %s53 = sphi 0, %s37
      %s57 = sphi 0, %s57
      %s59 = sphi 0, %s57
      %s60 = sphi 0, %s59
      %s74 = sphi 0, %s60
      %s80 = sphi 0, %s82
      %s83 = sphi 0, %s80
      %s84 = sphi 0, %s83
      %s100 = sphi 0, %s84
      %s106 = sphi 0, %s108
      %s109 = sphi 0, %s106
      %s110 = sphi 0, %s109
      %s126 = sphi 0, %s110
      %s132 = sphi 0, %s134
      %s135 = sphi 0, %s132
      %s136 = sphi 0, %s135
      %s152 = sphi 0, %s136
    $region4: #{base_gnn_forward.1} parent=1 // loop_header_branch
      %14 = sbr.rel (%p12) target = $region8
    $region5: #{base_gnn_forward.1} parent=1 // loop_body
      %s16 = ssub.s32 %s11, 1
      %s17 = ssub.s32 %s11, 2
      %s24 = sadd.s32 1, %s19
      %p25 = scmp.ge.s32.totalorder %s24, 1
      %s26 = scalar_select %p25, 0, %s24
      %s27 = sadd.s32 1, %s18
      %s28 = scalar_select %p25, %s27, %s18
      %p29 = scmp.ge.s32.totalorder %s28, 3
      %s30 = scalar_select %p29, 0, %s28
      %s31 = ssub.s32 %s19, %s26
      %p32 = scmp.eq.s32.totalorder %s31, 0
      %s34 = sadd.s32 %s33, 1
      %s35 = scalar_select %p32, %s33, %s34
      %p38 = pneg %p32
      %p39 = scmp.eq.s32.totalorder %s11, 2
      %p40 = por %p38, %p39
      %p41 = scmp.ne.s32.totalorder %s33, %s36
      %p42 = scmp.eq.s32.totalorder %s11, 0
      %p43 = por %p41, %p42
      %p44 = scmp.ne.s32.totalorder %s33, %s36
      %p45 = scmp.eq.s32.totalorder %s16, 2
      %p46 = por %p44, %p45
      %p47 = scmp.ne.s32.totalorder %s36, %s37
      %p48 = scmp.eq.s32.totalorder %s16, 0
      %p49 = por %p47, %p48
      %p50 = scmp.ne.s32.totalorder %s36, %s37
      %p51 = scmp.eq.s32.totalorder %s17, 2
      %p52 = por %p50, %p51
      %p54 = scmp.ne.s32.totalorder %s37, %s53
      %p55 = scmp.eq.s32.totalorder %s17, 0
      %p56 = por %p54, %p55
      %s58 = sadd.s32 %s57, 1
      %p61 = scmp.eq.s32.totalorder %s11, 2
      %p62 = scmp.ne.s32.totalorder %s57, %s59
      %p63 = scmp.eq.s32.totalorder %s11, 0
      %p64 = por %p62, %p63
      %p65 = scmp.ne.s32.totalorder %s57, %s59
      %p66 = scmp.eq.s32.totalorder %s16, 2
      %p67 = por %p65, %p66
      %p68 = scmp.ne.s32.totalorder %s59, %s60
      %p69 = scmp.eq.s32.totalorder %s16, 0
      %p70 = por %p68, %p69
      %p71 = scmp.ne.s32.totalorder %s59, %s60
      %p72 = scmp.eq.s32.totalorder %s17, 2
      %p73 = por %p71, %p72
      %p75 = scmp.ne.s32.totalorder %s60, %s74
      %p76 = scmp.eq.s32.totalorder %s17, 0
      %p77 = por %p75, %p76
      %s78 = ssub.s32 %s18, %s30
      %p79 = scmp.eq.s32.totalorder %s78, 0
      %s81 = sadd.s32 %s80, 1
      %s82 = scalar_select %p79, %s80, %s81
      %p85 = pneg %p79
      %p86 = scmp.eq.s32.totalorder %s11, 2
      %p87 = por %p85, %p86
      %p88 = scmp.ne.s32.totalorder %s80, %s83
      %p89 = scmp.eq.s32.totalorder %s11, 0
      %p90 = por %p88, %p89
      %p91 = scmp.ne.s32.totalorder %s80, %s83
      %p92 = scmp.eq.s32.totalorder %s16, 2
      %p93 = por %p91, %p92
      %p94 = scmp.ne.s32.totalorder %s83, %s84
      %p95 = scmp.eq.s32.totalorder %s16, 0
      %p96 = por %p94, %p95
      %p97 = scmp.ne.s32.totalorder %s83, %s84
      %p98 = scmp.eq.s32.totalorder %s17, 2
      %p99 = por %p97, %p98
      %p101 = scmp.ne.s32.totalorder %s84, %s100
      %p102 = scmp.eq.s32.totalorder %s17, 0
      %p103 = por %p101, %p102
      %s104 = ssub.s32 %s18, %s30
      %p105 = scmp.eq.s32.totalorder %s104, 0
      %s107 = sadd.s32 %s106, 1
      %s108 = scalar_select %p105, %s106, %s107
      %p111 = pneg %p105
      %p112 = scmp.eq.s32.totalorder %s11, 2
      %p113 = por %p111, %p112
      %p114 = scmp.ne.s32.totalorder %s106, %s109
      %p115 = scmp.eq.s32.totalorder %s11, 0
      %p116 = por %p114, %p115
      %p117 = scmp.ne.s32.totalorder %s106, %s109
      %p118 = scmp.eq.s32.totalorder %s16, 2
      %p119 = por %p117, %p118
      %p120 = scmp.ne.s32.totalorder %s109, %s110
      %p121 = scmp.eq.s32.totalorder %s16, 0
      %p122 = por %p120, %p121
      %p123 = scmp.ne.s32.totalorder %s109, %s110
      %p124 = scmp.eq.s32.totalorder %s17, 2
      %p125 = por %p123, %p124
      %p127 = scmp.ne.s32.totalorder %s110, %s126
      %p128 = scmp.eq.s32.totalorder %s17, 0
      %p129 = por %p127, %p128
      %s130 = ssub.s32 %s19, %s26
      %p131 = scmp.eq.s32.totalorder %s130, 0
      %s133 = sadd.s32 %s132, 1
      %s134 = scalar_select %p131, %s132, %s133
      %p137 = pneg %p131
      %p138 = scmp.eq.s32.totalorder %s11, 2
      %p139 = por %p137, %p138
      %p140 = scmp.ne.s32.totalorder %s132, %s135
      %p141 = scmp.eq.s32.totalorder %s11, 0
      %p142 = por %p140, %p141
      %p143 = scmp.ne.s32.totalorder %s132, %s135
      %p144 = scmp.eq.s32.totalorder %s16, 2
      %p145 = por %p143, %p144
      %p146 = scmp.ne.s32.totalorder %s135, %s136
      %p147 = scmp.eq.s32.totalorder %s16, 0
      %p148 = por %p146, %p147
      %p149 = scmp.ne.s32.totalorder %s135, %s136
      %p150 = scmp.eq.s32.totalorder %s17, 2
      %p151 = por %p149, %p150
      %p153 = scmp.ne.s32.totalorder %s136, %s152
      %p154 = scmp.eq.s32.totalorder %s17, 0
      %p155 = por %p153, %p154
      %p156 = scmp.le.s32.totalorder 1, %s11
      %p157 = scmp.lt.s32.totalorder %s11, 4
      %p158 = pnand %p156, %p157
      %p159 = pneg %p158
      // Predicated region
      $region9: #{base_gnn_forward.1} parent=5 // pred_check
        _
      $region10: #{base_gnn_forward.1} parent=5 // pred_check_branch
        %161 = sbr.rel (%p158) target = $region12
      $region11: #{base_gnn_forward.1} parent=5 // pred_region
        %s162 = ssub.s32 %s11, 1
        // Predicated region
        $region13: #{base_gnn_forward.1} parent=11 // pred_check
          %p163 = pneg %p49
        $region14: #{base_gnn_forward.1} parent=11 // pred_check_branch
          %165 = sbr.rel (%p163) target = $region16
        $region15: #{base_gnn_forward.1} parent=11 // pred_region
          %s166 = smul.u32 16, %s21
          %s168 = ssub.s32 1024, 1024
          %169 = vsyncadd [#allocation5], %s168
          %s170 = smul.addr %s166, 64
          %s171 = scalar_lea.hbm %s0, %s170
          %s172 = sshll.u32 [#allocation4], 4
          %s173 = int_to_ptr.vmem [resolvable:$true] %s172
          %178 = dma.hbm_to_vmem [thread:$0]  %s171, 1024, %s173, [#allocation5], 64, 64, 4
        $region16: #{base_gnn_forward.1} parent=11 // pred_fallthru
          _
        // Predicated region
        $region17: #{base_gnn_forward.1} parent=11 // pred_check
          %p179 = pneg %p70
        $region18: #{base_gnn_forward.1} parent=11 // pred_check_branch
          %181 = sbr.rel (%p179) target = $region20
        $region19: #{base_gnn_forward.1} parent=11 // pred_region
          _
        $region20: #{base_gnn_forward.1} parent=11 // pred_fallthru
          _
      $region12: #{base_gnn_forward.1} parent=5 // pred_fallthru
        _
      %p182 = scmp.lt.s32.totalorder %s11, 3
      // Predicated region
      $region21: #{base_gnn_forward.1} parent=5 // pred_check
        %p183 = pneg %p182
      $region22: #{base_gnn_forward.1} parent=5 // pred_check_branch
        %185 = sbr.rel (%p183) target = $region24
      $region23: #{base_gnn_forward.1} parent=5 // pred_region
        // Predicated region
        $region25: #{base_gnn_forward.1} parent=23 // pred_check
          %p186 = pneg %p90
        $region26: #{base_gnn_forward.1} parent=23 // pred_check_branch
          %188 = sbr.rel (%p186) target = $region28
        $region27: #{base_gnn_forward.1} parent=23 // pred_region
          %p189 = scmp.lt.s32.totalorder %s18, 2
          %s190 = scalar_select %p189, %s18, 2
          %s191 = smul.addr %s190, 16
          %s192 = smul.addr %s191, 4
          %s193 = scalar_lea.vmem %s2, %s192
        $region28: #{base_gnn_forward.1} parent=23 // pred_fallthru
          _
        // Predicated region
        $region29: #{base_gnn_forward.1} parent=23 // pred_check
          %p194 = pneg %p116
        $region30: #{base_gnn_forward.1} parent=23 // pred_check_branch
          %196 = sbr.rel (%p194) target = $region32
        $region31: #{base_gnn_forward.1} parent=23 // pred_region
          %p197 = scmp.lt.s32.totalorder %s18, 2
          %s198 = scalar_select %p197, %s18, 2
          %s199 = scalar_lea.vmem %s3, %s198
        $region32: #{base_gnn_forward.1} parent=23 // pred_fallthru
          _
      $region24: #{base_gnn_forward.1} parent=5 // pred_fallthru
        _
      %p200 = scmp.le.s32.totalorder 1, %s11
      %p201 = scmp.lt.s32.totalorder %s11, 4
      %p202 = pnand %p200, %p201
      %p203 = pneg %p202
      // Predicated region
      $region33: #{base_gnn_forward.1} parent=5 // pred_check
        _
      $region34: #{base_gnn_forward.1} parent=5 // pred_check_branch
        %205 = sbr.rel (%p202) target = $region36
      $region35: #{base_gnn_forward.1} parent=5 // pred_region
        %s206 = ssub.s32 %s11, 1
        // Predicated region
        $region37: #{base_gnn_forward.1} parent=35 // pred_check
          %p207 = pneg %p49
        $region38: #{base_gnn_forward.1} parent=35 // pred_check_branch
          %209 = sbr.rel (%p207) target = $region40
        $region39: #{base_gnn_forward.1} parent=35 // pred_region
          %210 = dma.done [#allocation5], 1024
        $region40: #{base_gnn_forward.1} parent=35 // pred_fallthru
          _
        %p211 = pneg %p49
        %p212 = pneg %p46
        %p213 = pneg %p70
        %p214 = pneg %p67
        %p215 = scmp.lt.s32.totalorder %s20, 2
        %s216 = scalar_select %p215, %s20, 2
        %s217 = smul.addr %s216, 16
        %s218 = smul.addr %s217, 4
        %s219 = scalar_lea.vmem %s2, %s218
        %p220 = pneg %p96
        %p221 = pneg %p93
        %p222 = scmp.lt.s32.totalorder %s20, 2
        %s223 = scalar_select %p222, %s20, 2
        %s224 = scalar_lea.vmem %s3, %s223
        %p225 = pneg %p122
        %p226 = pneg %p119
        %p227 = pneg %p148
        %p228 = pneg %p145
        %s229 = smul.u32 16, %s21
        %p230 = scmp.lt.s32.totalorder %s229, 15
        %s231 = scalar_select %p230, %s229, 15
        %s232 = smul.addr %s231, 8
        %s233 = scalar_lea.vmem %s4, %s232
        %s234 = smul.u32 16, %s21
        %p235 = scmp.lt.s32.totalorder %s20, 2
        %s236 = scalar_select %p235, %s20, 2
        %s237 = smul.addr %s236, 16
        %s238 = smul.addr %s237, 4
        %s239 = scalar_lea.vmem %s2, %s238
        %p240 = scmp.lt.s32.totalorder %s20, 2
        %s241 = scalar_select %p240, %s20, 2
        %s242 = scalar_lea.vmem %s3, %s241
        %s243 = smul.u32 16, %s21
        %p244 = scmp.lt.s32.totalorder %s243, 15
        %s245 = scalar_select %p244, %s243, 15
        %s246 = smul.addr %s245, 8
        %s247 = scalar_lea.vmem %s4, %s246
        %s248 = smul.u32 16, %s21
        %p250 = scmp.eq.s32.totalorder %s20, 0
        %p251 = scmp.eq.s32.totalorder %s21, 0
        %p252 = pnand %p250, %p251
        %p253 = pneg %p252
        // Predicated region
        $region41: #{base_gnn_forward.1} parent=35 // pred_check
          _
        $region42: #{base_gnn_forward.1} parent=35 // pred_check_branch
          %255 = sbr.rel (%p252) target = $region44
        $region43: #{base_gnn_forward.1} parent=35 // pred_region
          %v256 = vld [vmem:[%s1] sm:$0xf]
          %v257 = vld [vmem:[%s1 + $0x4] sm:$0xf]
          %v258 = vld [vmem:[%s1 + $0x8] sm:$0xf]
          %v259 = vld [vmem:[%s1 + $0xc] sm:$0xf]
          %v260 = vld [vmem:[%s1 + $0x10] sm:$0xf]
          %v261 = vld [vmem:[%s1 + $0x14] sm:$0xf]
          %v262 = vld [vmem:[%s1 + $0x18] sm:$0xf]
          %v263 = vld [vmem:[%s1 + $0x1c] sm:$0xf]
          %v264 = vld [vmem:[%s1 + $0x20] sm:$0xf]
          %v265 = vld [vmem:[%s1 + $0x24] sm:$0xf]
          %v266 = vld [vmem:[%s1 + $0x28] sm:$0xf]
          %v267 = vld [vmem:[%s1 + $0x2c] sm:$0xf]
          %v268 = vld [vmem:[%s1 + $0x30] sm:$0xf]
          %v269 = vld [vmem:[%s1 + $0x34] sm:$0xf]
          %v270 = vld [vmem:[%s1 + $0x38] sm:$0xf]
          %v271 = vld [vmem:[%s1 + $0x3c] sm:$0xf]
          %v288 = vunpack.c.l.b16 %v256
          %v289 = vunpack.c.l.b16 %v257
          %v290 = vunpack.c.l.b16 %v258
          %v291 = vunpack.c.l.b16 %v259
          %v292 = vunpack.c.l.b16 %v260
          %v293 = vunpack.c.l.b16 %v261
          %v294 = vunpack.c.l.b16 %v262
          %v295 = vunpack.c.l.b16 %v263
          %v296 = vunpack.c.l.b16 %v264
          %v297 = vunpack.c.l.b16 %v265
          %v298 = vunpack.c.l.b16 %v266
          %v299 = vunpack.c.l.b16 %v267
          %v300 = vunpack.c.l.b16 %v268
          %v301 = vunpack.c.l.b16 %v269
          %v302 = vunpack.c.l.b16 %v270
          %v303 = vunpack.c.l.b16 %v271
          %v304 = vpack.c.b16 %v289, %v288
          %v305 = vpack.c.b16 %v291, %v290
          %v306 = vpack.c.b16 %v293, %v292
          %v307 = vpack.c.b16 %v295, %v294
          %v308 = vpack.c.b16 %v297, %v296
          %v309 = vpack.c.b16 %v299, %v298
          %v310 = vpack.c.b16 %v301, %v300
          %v311 = vpack.c.b16 %v303, %v302
          %320 = vst [vmem:[#allocation2] sm:$0xff] %v304
          %321 = vst [vmem:[#allocation2 + $0x8] sm:$0xff] %v305
          %322 = vst [vmem:[#allocation2 + $0x10] sm:$0xff] %v306
          %323 = vst [vmem:[#allocation2 + $0x18] sm:$0xff] %v307
          %324 = vst [vmem:[#allocation2 + $0x20] sm:$0xff] %v308
          %325 = vst [vmem:[#allocation2 + $0x28] sm:$0xff] %v309
          %326 = vst [vmem:[#allocation2 + $0x30] sm:$0xff] %v310
          %327 = vst [vmem:[#allocation2 + $0x38] sm:$0xff] %v311
        $region44: #{base_gnn_forward.1} parent=35 // pred_fallthru
          _
        // Predicated region
        $region45: #{base_gnn_forward.1} parent=35 // pred_check
          %p328 = pneg %p251
        $region46: #{base_gnn_forward.1} parent=35 // pred_check_branch
          %330 = sbr.rel (%p328) target = $region48
        $region47: #{base_gnn_forward.1} parent=35 // pred_region
          %v331 = vld [vmem:[#allocation2] sm:$0xff]
          %v332 = vld [vmem:[#allocation2 + $0x8] sm:$0xff]
          %v333 = vld [vmem:[#allocation2 + $0x10] sm:$0xff]
          %v334 = vld [vmem:[#allocation2 + $0x18] sm:$0xff]
          %v335 = vld [vmem:[#allocation2 + $0x20] sm:$0xff]
          %v336 = vld [vmem:[#allocation2 + $0x28] sm:$0xff]
          %v337 = vld [vmem:[#allocation2 + $0x30] sm:$0xff]
          %v338 = vld [vmem:[#allocation2 + $0x38] sm:$0xff]
          %v339 = vld [vmem:[%s239] sm:$0xf]
          %v340 = vld [vmem:[%s239 + $0x4] sm:$0xf]
          %v341 = vld [vmem:[%s239 + $0x8] sm:$0xf]
          %v342 = vld [vmem:[%s239 + $0xc] sm:$0xf]
          %v343 = vld [vmem:[%s239 + $0x10] sm:$0xf]
          %v344 = vld [vmem:[%s239 + $0x14] sm:$0xf]
          %v345 = vld [vmem:[%s239 + $0x18] sm:$0xf]
          %v346 = vld [vmem:[%s239 + $0x1c] sm:$0xf]
          %v347 = vld [vmem:[%s239 + $0x20] sm:$0xf]
          %v348 = vld [vmem:[%s239 + $0x24] sm:$0xf]
          %v349 = vld [vmem:[%s239 + $0x28] sm:$0xf]
          %v350 = vld [vmem:[%s239 + $0x2c] sm:$0xf]
          %v351 = vld [vmem:[%s239 + $0x30] sm:$0xf]
          %v352 = vld [vmem:[%s239 + $0x34] sm:$0xf]
          %v353 = vld [vmem:[%s239 + $0x38] sm:$0xf]
          %v354 = vld [vmem:[%s239 + $0x3c] sm:$0xf]
          %v371 = vunpack.c.l.b16 %v339
          %v372 = vunpack.c.l.b16 %v340
          %v373 = vunpack.c.l.b16 %v341
          %v374 = vunpack.c.l.b16 %v342
          %v375 = vunpack.c.l.b16 %v343
          %v376 = vunpack.c.l.b16 %v344
          %v377 = vunpack.c.l.b16 %v345
          %v378 = vunpack.c.l.b16 %v346
          %v379 = vunpack.c.l.b16 %v347
          %v380 = vunpack.c.l.b16 %v348
          %v381 = vunpack.c.l.b16 %v349
          %v382 = vunpack.c.l.b16 %v350
          %v383 = vunpack.c.l.b16 %v351
          %v384 = vunpack.c.l.b16 %v352
          %v385 = vunpack.c.l.b16 %v353
          %v386 = vunpack.c.l.b16 %v354
          %v387 = vpack.c.b16 %v372, %v371
          %v388 = vpack.c.b16 %v374, %v373
          %v389 = vpack.c.b16 %v376, %v375
          %v390 = vpack.c.b16 %v378, %v377
          %v391 = vpack.c.b16 %v380, %v379
          %v392 = vpack.c.b16 %v382, %v381
          %v393 = vpack.c.b16 %v384, %v383
          %v394 = vpack.c.b16 %v386, %v385
          %403 = vmatprep.subr.bf16.mxu0 0
          %404 = vmatpush1.bf16.msra.mxu0 %v387
          %405 = vmatprep.subr.bf16.mxu0 0
          %406 = vmatpush1.bf16.msra.mxu0 %v388
          %407 = vmatprep.subr.bf16.mxu0 0
          %408 = vmatpush1.bf16.msra.mxu0 %v389
          %409 = vmatprep.subr.bf16.mxu0 0
          %410 = vmatpush1.bf16.msra.mxu0 %v390
          %411 = vmatprep.subr.bf16.mxu0 0
          %412 = vmatpush1.bf16.msra.mxu0 %v391
          %413 = vmatprep.subr.bf16.mxu0 0
          %414 = vmatpush1.bf16.msra.mxu0 %v392
          %415 = vmatprep.subr.bf16.mxu0 0
          %416 = vmatpush1.bf16.msra.mxu0 %v393
          %417 = vmatprep.subr.bf16.mxu0 0
          %418 = vmatpush1.bf16.msra.mxu0 %v394
          %419 = vmatprep.subr.bf16.mxu0 0
          %420 = vmatpush1.bf16.msra.mxu0 0
          %421 = vmatprep.subr.bf16.mxu0 0
          %422 = vmatpush1.bf16.msra.mxu0 0
          %423 = vmatprep.subr.bf16.mxu0 0
          %424 = vmatpush1.bf16.msra.mxu0 0
          %425 = vmatprep.subr.bf16.mxu0 0
          %426 = vmatpush1.bf16.msra.mxu0 0
          %427 = vmatprep.subr.bf16.mxu0 0
          %428 = vmatpush1.bf16.msra.mxu0 0
          %429 = vmatprep.subr.bf16.mxu0 0
          %430 = vmatpush1.bf16.msra.mxu0 0
          %431 = vmatprep.subr.bf16.mxu0 0
          %432 = vmatpush1.bf16.msra.mxu0 0
          %433 = vmatprep.subr.bf16.mxu0 0
          %434 = vmatpush1.bf16.msra.mxu0 0
          %435 = vmatprep.mubr.bf16.mxu0 0
          %436 = vmatmul.mubr.bf16.gmra.mrb[0].mxu0 %v331
          %v437 = vpop.f32.mrb[0].mxu0
          %v438 = vadd.f32 0.0, %v437
          %v439 = vpop.f32.mrb[0].mxu0
          %v440 = vpop.f32.mrb[0].mxu0
          %v441 = vadd.f32 0.0, %v440
          %v442 = vpop.f32.mrb[0].mxu0
          %443 = vmatprep.mubr.bf16.mxu0 0
          %444 = vmatmul.mubr.bf16.gmra.mrb[0].mxu0 %v332
          %v445 = vpop.f32.mrb[0].mxu0
          %v446 = vadd.f32 0.0, %v445
          %v447 = vpop.f32.mrb[0].mxu0
          %v448 = vpop.f32.mrb[0].mxu0
          %v449 = vadd.f32 0.0, %v448
          %v450 = vpop.f32.mrb[0].mxu0
          %451 = vmatprep.mubr.bf16.mxu0 0
          %452 = vmatmul.mubr.bf16.gmra.mrb[0].mxu0 %v333
          %v453 = vpop.f32.mrb[0].mxu0
          %v454 = vadd.f32 0.0, %v453
          %v455 = vpop.f32.mrb[0].mxu0
          %v456 = vpop.f32.mrb[0].mxu0
          %v457 = vadd.f32 0.0, %v456
          %v458 = vpop.f32.mrb[0].mxu0
          %459 = vmatprep.mubr.bf16.mxu0 0
          %460 = vmatmul.mubr.bf16.gmra.mrb[0].mxu0 %v334
          %v461 = vpop.f32.mrb[0].mxu0
          %v462 = vadd.f32 0.0, %v461
          %v463 = vpop.f32.mrb[0].mxu0
          %v464 = vpop.f32.mrb[0].mxu0
          %v465 = vadd.f32 0.0, %v464
          %v466 = vpop.f32.mrb[0].mxu0
          %467 = vmatprep.mubr.bf16.mxu0 0
          %468 = vmatmul.mubr.bf16.gmra.mrb[0].mxu0 %v335
          %v469 = vpop.f32.mrb[0].mxu0
          %v470 = vadd.f32 0.0, %v469
          %v471 = vpop.f32.mrb[0].mxu0
          %v472 = vpop.f32.mrb[0].mxu0
          %v473 = vadd.f32 0.0, %v472
          %v474 = vpop.f32.mrb[0].mxu0
          %475 = vmatprep.mubr.bf16.mxu0 0
          %476 = vmatmul.mubr.bf16.gmra.mrb[0].mxu0 %v336
          %v477 = vpop.f32.mrb[0].mxu0
          %v478 = vadd.f32 0.0, %v477
          %v479 = vpop.f32.mrb[0].mxu0
          %v480 = vpop.f32.mrb[0].mxu0
          %v481 = vadd.f32 0.0, %v480
          %v482 = vpop.f32.mrb[0].mxu0
          %483 = vmatprep.mubr.bf16.mxu0 0
          %484 = vmatmul.mubr.bf16.gmra.mrb[0].mxu0 %v337
          %v485 = vpop.f32.mrb[0].mxu0
          %v486 = vadd.f32 0.0, %v485
          %v487 = vpop.f32.mrb[0].mxu0
          %v488 = vpop.f32.mrb[0].mxu0
          %v489 = vadd.f32 0.0, %v488
          %v490 = vpop.f32.mrb[0].mxu0
          %491 = vmatprep.mubr.bf16.mxu0 0
          %492 = vmatmul.mubr.bf16.gmra.mrb[0].mxu0 %v338
          %v493 = vpop.f32.mrb[0].mxu0
          %v494 = vadd.f32 0.0, %v493
          %v495 = vpop.f32.mrb[0].mxu0
          %v496 = vpop.f32.mrb[0].mxu0
          %v497 = vadd.f32 0.0, %v496
          %v498 = vpop.f32.mrb[0].mxu0
          %499 = vdwg.mxu0
          %v500 = vpack.c.bf16 %v441, %v438
          %v501 = vpack.c.bf16 %v449, %v446
          %v502 = vpack.c.bf16 %v457, %v454
          %v503 = vpack.c.bf16 %v465, %v462
          %v504 = vpack.c.bf16 %v473, %v470
          %v505 = vpack.c.bf16 %v481, %v478
          %v506 = vpack.c.bf16 %v489, %v486
          %v507 = vpack.c.bf16 %v497, %v494
          %508 = vst [vmem:[#allocation3] sm:$0xff] %v500
          %509 = vst [vmem:[#allocation3 + $0x8] sm:$0xff] %v501
          %510 = vst [vmem:[#allocation3 + $0x10] sm:$0xff] %v502
          %511 = vst [vmem:[#allocation3 + $0x18] sm:$0xff] %v503
          %512 = vst [vmem:[#allocation3 + $0x20] sm:$0xff] %v504
          %513 = vst [vmem:[#allocation3 + $0x28] sm:$0xff] %v505
          %514 = vst [vmem:[#allocation3 + $0x30] sm:$0xff] %v506
          %515 = vst [vmem:[#allocation3 + $0x38] sm:$0xff] %v507
        $region48: #{base_gnn_forward.1} parent=35 // pred_fallthru
          _
        %v516 = vld [vmem:[#allocation4] sm:$0xf]
        %v517 = vld [vmem:[#allocation4 + $0x4] sm:$0xf]
        %v518 = vld [vmem:[#allocation4 + $0x8] sm:$0xf]
        %v519 = vld [vmem:[#allocation4 + $0xc] sm:$0xf]
        %v520 = vld [vmem:[#allocation4 + $0x10] sm:$0xf]
        %v521 = vld [vmem:[#allocation4 + $0x14] sm:$0xf]
        %v522 = vld [vmem:[#allocation4 + $0x18] sm:$0xf]
        %v523 = vld [vmem:[#allocation4 + $0x1c] sm:$0xf]
        %v524 = vld [vmem:[#allocation4 + $0x20] sm:$0xf]
        %v525 = vld [vmem:[#allocation4 + $0x24] sm:$0xf]
        %v526 = vld [vmem:[#allocation4 + $0x28] sm:$0xf]
        %v527 = vld [vmem:[#allocation4 + $0x2c] sm:$0xf]
        %v528 = vld [vmem:[#allocation4 + $0x30] sm:$0xf]
        %v529 = vld [vmem:[#allocation4 + $0x34] sm:$0xf]
        %v530 = vld [vmem:[#allocation4 + $0x38] sm:$0xf]
        %v531 = vld [vmem:[#allocation4 + $0x3c] sm:$0xf]
        %v532 = vld [vmem:[#allocation3] sm:$0xff]
        %v533 = vld [vmem:[#allocation3 + $0x8] sm:$0xff]
        %v534 = vld [vmem:[#allocation3 + $0x10] sm:$0xff]
        %v535 = vld [vmem:[#allocation3 + $0x18] sm:$0xff]
        %v536 = vld [vmem:[#allocation3 + $0x20] sm:$0xff]
        %v537 = vld [vmem:[#allocation3 + $0x28] sm:$0xff]
        %v538 = vld [vmem:[#allocation3 + $0x30] sm:$0xff]
        %v539 = vld [vmem:[#allocation3 + $0x38] sm:$0xff]
        %v540 = vld [vmem:[%s242] sm:$0x1]
        %v542 = vlaneseq
        %v543 = vshrl.u32 %v542, 7
        %v544 = vsub.s32 0, %v543
        %v545 = vrot.slane %v540, %v544
        %v563 = vunpack.c.l.b16 %v516
        %v564 = vunpack.c.l.b16 %v517
        %v565 = vunpack.c.l.b16 %v518
        %v566 = vunpack.c.l.b16 %v519
        %v567 = vunpack.c.l.b16 %v520
        %v568 = vunpack.c.l.b16 %v521
        %v569 = vunpack.c.l.b16 %v522
        %v570 = vunpack.c.l.b16 %v523
        %v571 = vunpack.c.l.b16 %v524
        %v572 = vunpack.c.l.b16 %v525
        %v573 = vunpack.c.l.b16 %v526
        %v574 = vunpack.c.l.b16 %v527
        %v575 = vunpack.c.l.b16 %v528
        %v576 = vunpack.c.l.b16 %v529
        %v577 = vunpack.c.l.b16 %v530
        %v578 = vunpack.c.l.b16 %v531
        %v579 = vpack.c.b16 %v564, %v563
        %v580 = vpack.c.b16 %v566, %v565
        %v581 = vpack.c.b16 %v568, %v567
        %v582 = vpack.c.b16 %v570, %v569
        %v583 = vpack.c.b16 %v572, %v571
        %v584 = vpack.c.b16 %v574, %v573
        %v585 = vpack.c.b16 %v576, %v575
        %v586 = vpack.c.b16 %v578, %v577
        %595 = vmatprep.subr.bf16.mxu0 0
        %596 = vmatpush1.bf16.msra.mxu0 %v532
        %597 = vmatprep.subr.bf16.mxu0 0
        %598 = vmatpush1.bf16.msra.mxu0 %v533
        %599 = vmatprep.subr.bf16.mxu0 0
        %600 = vmatpush1.bf16.msra.mxu0 %v534
        %601 = vmatprep.subr.bf16.mxu0 0
        %602 = vmatpush1.bf16.msra.mxu0 %v535
        %603 = vmatprep.subr.bf16.mxu0 0
        %604 = vmatpush1.bf16.msra.mxu0 %v536
        %605 = vmatprep.subr.bf16.mxu0 0
        %606 = vmatpush1.bf16.msra.mxu0 %v537
        %607 = vmatprep.subr.bf16.mxu0 0
        %608 = vmatpush1.bf16.msra.mxu0 %v538
        %609 = vmatprep.subr.bf16.mxu0 0
        %610 = vmatpush1.bf16.msra.mxu0 %v539
        %611 = vmatprep.subr.bf16.mxu0 0
        %612 = vmatpush1.bf16.msra.mxu0 0
        %613 = vmatprep.subr.bf16.mxu0 0
        %614 = vmatpush1.bf16.msra.mxu0 0
        %615 = vmatprep.subr.bf16.mxu0 0
        %616 = vmatpush1.bf16.msra.mxu0 0
        %617 = vmatprep.subr.bf16.mxu0 0
        %618 = vmatpush1.bf16.msra.mxu0 0
        %619 = vmatprep.subr.bf16.mxu0 0
        %620 = vmatpush1.bf16.msra.mxu0 0
        %621 = vmatprep.subr.bf16.mxu0 0
        %622 = vmatpush1.bf16.msra.mxu0 0
        %623 = vmatprep.subr.bf16.mxu0 0
        %624 = vmatpush1.bf16.msra.mxu0 0
        %625 = vmatprep.subr.bf16.mxu0 0
        %626 = vmatpush1.bf16.msra.mxu0 0
        %627 = vmatprep.mubr.bf16.mxu0 0
        %628 = vmatmul.mubr.bf16.gmra.mrb[0].mxu0 %v579
        %v629 = vpop.f32.mrb[0].mxu0
        %v630 = vadd.f32 %v545, %v629
        %v631 = vpop.f32.mrb[0].mxu0
        %v632 = vpop.f32.mrb[0].mxu0
        %v633 = vadd.f32 %v545, %v632
        %v634 = vpop.f32.mrb[0].mxu0
        %635 = vmatprep.mubr.bf16.mxu0 0
        %636 = vmatmul.mubr.bf16.gmra.mrb[0].mxu0 %v580
        %v637 = vpop.f32.mrb[0].mxu0
        %v638 = vadd.f32 %v545, %v637
        %v639 = vpop.f32.mrb[0].mxu0
        %v640 = vpop.f32.mrb[0].mxu0
        %v641 = vadd.f32 %v545, %v640
        %v642 = vpop.f32.mrb[0].mxu0
        %643 = vmatprep.mubr.bf16.mxu0 0
        %644 = vmatmul.mubr.bf16.gmra.mrb[0].mxu0 %v581
        %v645 = vpop.f32.mrb[0].mxu0
        %v646 = vadd.f32 %v545, %v645
        %v647 = vpop.f32.mrb[0].mxu0
        %v648 = vpop.f32.mrb[0].mxu0
        %v649 = vadd.f32 %v545, %v648
        %v650 = vpop.f32.mrb[0].mxu0
        %651 = vmatprep.mubr.bf16.mxu0 0
        %652 = vmatmul.mubr.bf16.gmra.mrb[0].mxu0 %v582
        %v653 = vpop.f32.mrb[0].mxu0
        %v654 = vadd.f32 %v545, %v653
        %v655 = vpop.f32.mrb[0].mxu0
        %v656 = vpop.f32.mrb[0].mxu0
        %v657 = vadd.f32 %v545, %v656
        %v658 = vpop.f32.mrb[0].mxu0
        %659 = vmatprep.mubr.bf16.mxu0 0
        %660 = vmatmul.mubr.bf16.gmra.mrb[0].mxu0 %v583
        %v661 = vpop.f32.mrb[0].mxu0
        %v662 = vadd.f32 %v545, %v661
        %v663 = vpop.f32.mrb[0].mxu0
        %v664 = vpop.f32.mrb[0].mxu0
        %v665 = vadd.f32 %v545, %v664
        %v666 = vpop.f32.mrb[0].mxu0
        %667 = vmatprep.mubr.bf16.mxu0 0
        %668 = vmatmul.mubr.bf16.gmra.mrb[0].mxu0 %v584
        %v669 = vpop.f32.mrb[0].mxu0
        %v670 = vadd.f32 %v545, %v669
        %v671 = vpop.f32.mrb[0].mxu0
        %v672 = vpop.f32.mrb[0].mxu0
        %v673 = vadd.f32 %v545, %v672
        %v674 = vpop.f32.mrb[0].mxu0
        %675 = vmatprep.mubr.bf16.mxu0 0
        %676 = vmatmul.mubr.bf16.gmra.mrb[0].mxu0 %v585
        %v677 = vpop.f32.mrb[0].mxu0
        %v678 = vadd.f32 %v545, %v677
        %v679 = vpop.f32.mrb[0].mxu0
        %v680 = vpop.f32.mrb[0].mxu0
        %v681 = vadd.f32 %v545, %v680
        %v682 = vpop.f32.mrb[0].mxu0
        %683 = vmatprep.mubr.bf16.mxu0 0
        %684 = vmatmul.mubr.bf16.gmra.mrb[0].mxu0 %v586
        %v685 = vpop.f32.mrb[0].mxu0
        %v686 = vadd.f32 %v545, %v685
        %v687 = vpop.f32.mrb[0].mxu0
        %v688 = vpop.f32.mrb[0].mxu0
        %v689 = vadd.f32 %v545, %v688
        %v690 = vpop.f32.mrb[0].mxu0
        %691 = vdwg.mxu0
        %p692 = scmp.ne.s32.totalorder %s20, 2
        // Predicated region
        $region49: #{base_gnn_forward.1} parent=35 // pred_check
          %p693 = pneg %p692
        $region50: #{base_gnn_forward.1} parent=35 // pred_check_branch
          %695 = sbr.rel (%p693) target = $region52
        $region51: #{base_gnn_forward.1} parent=35 // pred_region
          %v696 = vmax.f32 %v630, 0.0
          %v697 = vmax.f32 %v633, 0.0
          %v698 = vmax.f32 %v638, 0.0
          %v699 = vmax.f32 %v641, 0.0
          %v700 = vmax.f32 %v646, 0.0
          %v701 = vmax.f32 %v649, 0.0
          %v702 = vmax.f32 %v654, 0.0
          %v703 = vmax.f32 %v657, 0.0
          %v704 = vmax.f32 %v662, 0.0
          %v705 = vmax.f32 %v665, 0.0
          %v706 = vmax.f32 %v670, 0.0
          %v707 = vmax.f32 %v673, 0.0
          %v708 = vmax.f32 %v678, 0.0
          %v709 = vmax.f32 %v681, 0.0
          %v710 = vmax.f32 %v686, 0.0
          %v711 = vmax.f32 %v689, 0.0
          %s712 = smul.u32 %s21, 128
          %v713 = vpack.c.bf16 %v697, %v696
          %v714 = vpack.c.bf16 %v699, %v698
          %v715 = vpack.c.bf16 %v701, %v700
          %v716 = vpack.c.bf16 %v703, %v702
          %v717 = vpack.c.bf16 %v705, %v704
          %v718 = vpack.c.bf16 %v707, %v706
          %v719 = vpack.c.bf16 %v709, %v708
          %v720 = vpack.c.bf16 %v711, %v710
          %s721 = sshra.s32 %s712, 4
          %s722 = sand.u32 %s712, 15
          %s723 = smul.addr %s721, 8
          %s724 = scalar_lea.vmem [#allocation2], %s723
          %725 = vst [vmem:[%s724] sm:$0xff] %v713
          %726 = vst [vmem:[%s724 + $0x8] sm:$0xff] %v714
          %727 = vst [vmem:[%s724 + $0x10] sm:$0xff] %v715
          %728 = vst [vmem:[%s724 + $0x18] sm:$0xff] %v716
          %729 = vst [vmem:[%s724 + $0x20] sm:$0xff] %v717
          %730 = vst [vmem:[%s724 + $0x28] sm:$0xff] %v718
          %731 = vst [vmem:[%s724 + $0x30] sm:$0xff] %v719
          %732 = vst [vmem:[%s724 + $0x38] sm:$0xff] %v720
          %733 = vst [vmem:[%s247] sm:$0xff] %v696
          %734 = vst [vmem:[%s247 + $0x8] sm:$0xff] %v697
          %735 = vst [vmem:[%s247 + $0x10] sm:$0xff] %v698
          %736 = vst [vmem:[%s247 + $0x18] sm:$0xff] %v699
          %737 = vst [vmem:[%s247 + $0x20] sm:$0xff] %v700
          %738 = vst [vmem:[%s247 + $0x28] sm:$0xff] %v701
          %739 = vst [vmem:[%s247 + $0x30] sm:$0xff] %v702
          %740 = vst [vmem:[%s247 + $0x38] sm:$0xff] %v703
          %741 = vst [vmem:[%s247 + $0x40] sm:$0xff] %v704
          %742 = vst [vmem:[%s247 + $0x48] sm:$0xff] %v705
          %743 = vst [vmem:[%s247 + $0x50] sm:$0xff] %v706
          %744 = vst [vmem:[%s247 + $0x58] sm:$0xff] %v707
          %745 = vst [vmem:[%s247 + $0x60] sm:$0xff] %v708
          %746 = vst [vmem:[%s247 + $0x68] sm:$0xff] %v709
          %747 = vst [vmem:[%s247 + $0x70] sm:$0xff] %v710
          %748 = vst [vmem:[%s247 + $0x78] sm:$0xff] %v711
        $region52: #{base_gnn_forward.1} parent=35 // pred_fallthru
          _
        %p749 = scmp.eq.s32.totalorder %s20, 2
        // Predicated region
        $region53: #{base_gnn_forward.1} parent=35 // pred_check
          %p750 = pneg %p749
        $region54: #{base_gnn_forward.1} parent=35 // pred_check_branch
          %752 = sbr.rel (%p750) target = $region56
        $region55: #{base_gnn_forward.1} parent=35 // pred_region
          %753 = vst [vmem:[%s247] sm:$0xff] %v630
          %754 = vst [vmem:[%s247 + $0x8] sm:$0xff] %v633
          %755 = vst [vmem:[%s247 + $0x10] sm:$0xff] %v638
          %756 = vst [vmem:[%s247 + $0x18] sm:$0xff] %v641
          %757 = vst [vmem:[%s247 + $0x20] sm:$0xff] %v646
          %758 = vst [vmem:[%s247 + $0x28] sm:$0xff] %v649
          %759 = vst [vmem:[%s247 + $0x30] sm:$0xff] %v654
          %760 = vst [vmem:[%s247 + $0x38] sm:$0xff] %v657
          %761 = vst [vmem:[%s247 + $0x40] sm:$0xff] %v662
          %762 = vst [vmem:[%s247 + $0x48] sm:$0xff] %v665
          %763 = vst [vmem:[%s247 + $0x50] sm:$0xff] %v670
          %764 = vst [vmem:[%s247 + $0x58] sm:$0xff] %v673
          %765 = vst [vmem:[%s247 + $0x60] sm:$0xff] %v678
          %766 = vst [vmem:[%s247 + $0x68] sm:$0xff] %v681
          %767 = vst [vmem:[%s247 + $0x70] sm:$0xff] %v686
          %768 = vst [vmem:[%s247 + $0x78] sm:$0xff] %v689
        $region56: #{base_gnn_forward.1} parent=35 // pred_fallthru
          _
        %s769 = smul.u32 16, %s21
        %p770 = scmp.lt.s32.totalorder %s769, 15
        %s771 = scalar_select %p770, %s769, 15
        %s772 = smul.addr %s771, 8
        %s773 = scalar_lea.vmem %s4, %s772
        // Predicated region
        $region57: #{base_gnn_forward.1} parent=35 // pred_check
          %p774 = pneg %p145
        $region58: #{base_gnn_forward.1} parent=35 // pred_check_branch
          %776 = sbr.rel (%p774) target = $region60
        $region59: #{base_gnn_forward.1} parent=35 // pred_region
          %s777 = smul.u32 16, %s21
        $region60: #{base_gnn_forward.1} parent=35 // pred_fallthru
          _
        // Predicated region
        $region61: #{base_gnn_forward.1} parent=35 // pred_check
          %p778 = pneg %p145
        $region62: #{base_gnn_forward.1} parent=35 // pred_check_branch
          %780 = sbr.rel (%p778) target = $region64
        $region63: #{base_gnn_forward.1} parent=35 // pred_region
          %s781 = smul.u32 16, %s21
          %p782 = scmp.lt.s32.totalorder %s781, 15
          %s783 = scalar_select %p782, %s781, 15
          %s784 = smul.addr %s783, 8
          %s785 = scalar_lea.vmem %s4, %s784
        $region64: #{base_gnn_forward.1} parent=35 // pred_fallthru
          _
      $region36: #{base_gnn_forward.1} parent=5 // pred_fallthru
        _
      %p786 = scmp.le.s32.totalorder 2, %s11
      // Predicated region
      $region65: #{base_gnn_forward.1} parent=5 // pred_check
        %p787 = pneg %p786
      $region66: #{base_gnn_forward.1} parent=5 // pred_check_branch
        %789 = sbr.rel (%p787) target = $region68
      $region67: #{base_gnn_forward.1} parent=5 // pred_region
        %s790 = ssub.s32 %s11, 2
      $region68: #{base_gnn_forward.1} parent=5 // pred_fallthru
        _
    $region6: #{base_gnn_forward.1} parent=1 // loop_footer
      %s15 = sadd.s32 1, %s11
    $region7: #{base_gnn_forward.1} parent=1 // loop_footer_branch
      %10 = sbr.rel target = $region3
    $region8: #{base_gnn_forward.1} parent=1 // loop_exit
      _
    %791 = vsyncpa [#allocation5], 1
    %s792 = scalar_lea.sflag [#allocation5], 1
    %793 = vsyncpa %s792, 1

</llo_original>
